<compile_context>
chip_gen: v5e
topology: v5e:2x2
jax: 0.10.0
libtpu: 0.0.40
codegen_flags: <defaults>
</compile_context>

<pallas_src>
import jax
import jax.numpy as jnp
from jax.experimental import pallas as pl
from jax.experimental.pallas import tpu as pltpu


def _round_up(v, m):
    return (v + m - 1) // m * m


# ----------------------------------------------------------------------------
# Kernel 1 — per row tile of A:
#   H[rows]  = ReLU(A[rows] @ Z1 + b1)               (Z1 = X @ W1, hoisted to wrapper)
#   Z2[rows] = H[rows] @ [W_mu || W_logvar]           (fused; hides under the A DMA)
# ----------------------------------------------------------------------------
def gcn_layer1_kernel(a_ref, z1_ref, b1_ref, wcat_ref, z2_ref):
    agg = jnp.dot(a_ref[...], z1_ref[...], preferred_element_type=jnp.float32)
    h = jnp.maximum(agg + b1_ref[...], 0.0)                  # bias + ReLU in epilogue
    z2 = jnp.dot(h.astype(wcat_ref.dtype), wcat_ref[...],
                 preferred_element_type=jnp.float32)
    z2_ref[...] = z2.astype(z2_ref.dtype)


# ----------------------------------------------------------------------------
# Kernel 2 — per row tile of A:
#   OUT[rows] = A[rows] @ Z2 + [b_mu || b_logvar]
# ----------------------------------------------------------------------------
def gcn_layer2_kernel(a_ref, z2_ref, bcat_ref, out_ref):
    agg = jnp.dot(a_ref[...], z2_ref[...], preferred_element_type=jnp.float32)
    out_ref[...] = (agg + bcat_ref[...]).astype(out_ref.dtype)


# ----------------------------------------------------------------------------
# Plain-JAX glue
# ----------------------------------------------------------------------------
def gcn_normalized_adjacency(edge_index, num_nodes):
    """Dense D^-1/2 (A + I) D^-1/2 with A[dst, src] = 1 for each edge (src -> dst)."""
    src, dst = edge_index[0], edge_index[1]
    a = jnp.zeros((num_nodes, num_nodes), jnp.float32).at[dst, src].set(1.0)
    a = a + jnp.eye(num_nodes, dtype=jnp.float32)
    deg = jnp.sum(a, axis=1)
    d_inv_sqrt = jnp.where(deg > 0, 1.0 / jnp.sqrt(deg), 0.0)
    return d_inv_sqrt[:, None] * a * d_inv_sqrt[None, :]


def vgae_encoder(x, edge_index, params, *, row_tile=512):
    n, _ = x.shape
    hidden = params["w1"].shape[1]
    out = params["wmu"].shape[1]

    # Pad node count to a multiple of 128 (and of the row tile): lane-aligned
    # contraction dim, bf16 sublane-16 safe, no masked MXU K-passes.
    n_pad = _round_up(n, 128)
    tile = min(row_tile, n_pad)
    n_pad = _round_up(n_pad, tile)
    num_tiles = n_pad // tile
    co_pad = _round_up(2 * out, 128)

    # Dense symmetric-normalized adjacency -> bf16 (the only O(N^2) operand).
    # TODO(synk): cache a_pad across calls to mirror GCNConv(cached=True), and
    # quantize A to int8 (v5e/v6e) / fp8 (v7x) with a scale to halve its HBM traffic.
    a_hat = gcn_normalized_adjacency(edge_index, n)
    a_pad = jnp.zeros((n_pad, n_pad), jnp.bfloat16).at[:n, :n].set(
        a_hat.astype(jnp.bfloat16))

    # Hoisted layer-1 feature transform: Z1 = X @ W1 (f32 matmul, cast once to bf16).
    z1 = (x.astype(jnp.float32) @ params["w1"].astype(jnp.float32)).astype(jnp.bfloat16)
    z1_pad = jnp.zeros((n_pad, hidden), jnp.bfloat16).at[:n, :].set(z1)

    # Fused mu/logvar weights & biases, lane-padded to 128.
    wcat = jnp.concatenate([params["wmu"], params["wlv"]], axis=1)
    bcat = jnp.concatenate([params["bmu"], params["blv"]], axis=1)
    wcat = jnp.zeros((hidden, co_pad), jnp.bfloat16).at[:, :2 * out].set(
        wcat.astype(jnp.bfloat16))
    bcat = jnp.zeros((1, co_pad), jnp.float32).at[:, :2 * out].set(
        bcat.astype(jnp.float32))
    b1 = params["b1"].astype(jnp.float32)

    # Explicit VMEM budget: the double-buffered A row tile dominates.  Keep the
    # limit under v7x's 64 MiB physical VMEM; v5e/v6e (128 MiB) are covered too.
    a_buf = 2 * tile * n_pad * 2
    resident = 2 * n_pad * 128 * 2 + 2 * tile * co_pad * 2 + 2 * tile * co_pad * 2
    vmem_limit = int(min(max(a_buf + resident + (4 << 20), 32 << 20), 48 << 20))

    cparams = pltpu.CompilerParams(
        # Row tiles are fully independent -> "parallel" shards them across both
        # TensorCores on v7x (no effect on single-TC v5e/v6e).
        dimension_semantics=("parallel",),
        vmem_limit_bytes=vmem_limit,
    )

    # ---- layer 1 (+ fused projection): Z2 = ReLU(A @ Z1 + b1) @ [W_mu||W_logvar] ----
    z2 = pl.pallas_call(
        gcn_layer1_kernel,
        out_shape=jax.ShapeDtypeStruct((n_pad, co_pad), jnp.bfloat16),
        grid_spec=pltpu.PrefetchScalarGridSpec(
            num_scalar_prefetch=0,
            grid=(num_tiles,),
            in_specs=[
                pl.BlockSpec((tile, n_pad), lambda i: (i, 0)),      # A rows (streamed)
                pl.BlockSpec((n_pad, hidden), lambda i: (0, 0)),    # Z1 (resident, tiny)
                pl.BlockSpec((1, hidden), lambda i: (0, 0)),        # b1
                pl.BlockSpec((hidden, co_pad), lambda i: (0, 0)),   # [W_mu || W_logvar]
            ],
            out_specs=pl.BlockSpec((tile, co_pad), lambda i: (i, 0)),
        ),
        compiler_params=cparams,
    )(a_pad, z1_pad, b1, wcat)

    # ---- layer 2: OUT = A @ Z2 + [b_mu || b_logvar] ---------------------------------
    out_packed = pl.pallas_call(
        gcn_layer2_kernel,
        out_shape=jax.ShapeDtypeStruct((n_pad, co_pad), jnp.bfloat16),
        grid_spec=pltpu.PrefetchScalarGridSpec(
            num_scalar_prefetch=0,
            grid=(num_tiles,),
            in_specs=[
                pl.BlockSpec((tile, n_pad), lambda i: (i, 0)),      # A rows (streamed)
                pl.BlockSpec((n_pad, co_pad), lambda i: (0, 0)),    # Z2 (resident, tiny)
                pl.BlockSpec((1, co_pad), lambda i: (0, 0)),        # [b_mu || b_logvar]
            ],
            out_specs=pl.BlockSpec((tile, co_pad), lambda i: (i, 0)),
        ),
        compiler_params=cparams,
    )(a_pad, z2, bcat)

    out_f32 = out_packed[:n].astype(jnp.float32)
    mu = out_f32[:, :out]
    logvar = out_f32[:, out:2 * out]
    return mu, logvar


def init_params(key, in_channels, hidden, out_channels):
    k1, k2, k3 = jax.random.split(key, 3)

    def glorot(k, shape):
        limit = jnp.sqrt(6.0 / (shape[0] + shape[1]))
        return jax.random.uniform(k, shape, jnp.float32, -limit, limit)

    return {
        "w1":  glorot(k1, (in_channels, hidden)),
        "b1":  jnp.zeros((1, hidden), jnp.float32),
        "wmu": glorot(k2, (hidden, out_channels)),
        "bmu": jnp.zeros((1, out_channels), jnp.float32),
        "wlv": glorot(k3, (hidden, out_channels)),
        "blv": jnp.zeros((1, out_channels), jnp.float32),
    }


if __name__ == "__main__":
    key = jax.random.PRNGKey(0)
    kx, kp = jax.random.split(key)

    num_nodes = 8
    in_channels = 4
    hidden = 32
    out_channels = 16

    # Node features [N, in_channels]
    x = jax.random.normal(kx, (num_nodes, in_channels), jnp.float32)

    # Ring graph, both directions -> E = 16 edges, edge_index shape [2, E]
    src = jnp.arange(num_nodes, dtype=jnp.int32)
    dst = (src + 1) % num_nodes
    edge_index = jnp.concatenate(
        [jnp.stack([src, dst], axis=0), jnp.stack([dst, src], axis=0)], axis=1)

    params = init_params(kp, in_channels, hidden, out_channels)

    mu, logvar = vgae_encoder(x, edge_index, params)
    jax.block_until_ready((mu, logvar))

    assert mu.shape == (num_nodes, out_channels)
    assert logvar.shape == (num_nodes, out_channels)
    assert bool(jnp.all(jnp.isfinite(mu))) and bool(jnp.all(jnp.isfinite(logvar)))
    print("KERNEL_OK")
</pallas_src>

<mosaic_0001>
module attributes {stable_mosaic.version = 11 : i64} {
  func.func @gcn_layer1_kernel(%arg0: i32, %arg1: memref<128x128xbf16, #tpu.memory_space<vmem>>, %arg2: memref<128x32xbf16, #tpu.memory_space<vmem>>, %arg3: memref<1x32xf32, #tpu.memory_space<vmem>>, %arg4: memref<32x128xbf16, #tpu.memory_space<vmem>>, %arg5: memref<128x128xbf16, #tpu.memory_space<vmem>>) attributes {dimension_semantics = [#tpu.dimension_semantics<parallel>], iteration_bounds = array<i64: 1>, scalar_prefetch = 0 : i64, scratch_operands = 0 : i64, tpu.core_type = #tpu.core_type<tc>, window_params = [{transform_indices = @transform_0, window_bounds = array<i64: 128, 128>}, {pipeline_mode = #tpu.pipeline_mode<synchronous>, transform_indices = @transform_1, window_bounds = array<i64: 128, 32>}, {pipeline_mode = #tpu.pipeline_mode<synchronous>, transform_indices = @transform_2, window_bounds = array<i64: 1, 32>}, {pipeline_mode = #tpu.pipeline_mode<synchronous>, transform_indices = @transform_3, window_bounds = array<i64: 32, 128>}, {transform_indices = @transform_4, window_bounds = array<i64: 128, 128>}]} {
    %c0 = arith.constant 0 : index
    %c0_0 = arith.constant 0 : index
    %0 = vector.load %arg1[%c0, %c0_0] : memref<128x128xbf16, #tpu.memory_space<vmem>>, vector<128x128xbf16>
    %c0_1 = arith.constant 0 : index
    %c0_2 = arith.constant 0 : index
    %1 = vector.load %arg2[%c0_1, %c0_2] : memref<128x32xbf16, #tpu.memory_space<vmem>>, vector<128x32xbf16>
    %cst = arith.constant dense<0.000000e+00> : vector<128x32xf32>
    %2 = tpu.matmul %0, %1, %cst {dimension_numbers = #tpu.dot_dimension_numbers<[1], [0], [0], [1], [0, 0, 1, 1], [], []>} : vector<128x128xbf16>, vector<128x32xbf16>, vector<128x32xf32> -> vector<128x32xf32>
    %c0_3 = arith.constant 0 : index
    %c0_4 = arith.constant 0 : index
    %3 = vector.load %arg3[%c0_3, %c0_4] : memref<1x32xf32, #tpu.memory_space<vmem>>, vector<1x32xf32>
    %4 = vector.broadcast %3 : vector<1x32xf32> to vector<128x32xf32>
    %5 = arith.addf %2, %4 : vector<128x32xf32>
    %cst_5 = arith.constant 0.000000e+00 : f32
    %6 = vector.broadcast %cst_5 : f32 to vector<128x32xf32>
    %7 = arith.maximumf %5, %6 : vector<128x32xf32>
    %8 = arith.truncf %7 : vector<128x32xf32> to vector<128x32xbf16>
    %c0_6 = arith.constant 0 : index
    %c0_7 = arith.constant 0 : index
    %9 = vector.load %arg4[%c0_6, %c0_7] : memref<32x128xbf16, #tpu.memory_space<vmem>>, vector<32x128xbf16>
    %cst_8 = arith.constant dense<0.000000e+00> : vector<128x128xf32>
    %10 = tpu.matmul %8, %9, %cst_8 {dimension_numbers = #tpu.dot_dimension_numbers<[1], [0], [0], [1], [0, 0, 1, 1], [], []>} : vector<128x32xbf16>, vector<32x128xbf16>, vector<128x128xf32> -> vector<128x128xf32>
    %11 = arith.truncf %10 : vector<128x128xf32> to vector<128x128xbf16>
    %c0_9 = arith.constant 0 : index
    %c0_10 = arith.constant 0 : index
    %12 = vector.load %arg5[%c0_9, %c0_10] : memref<128x128xbf16, #tpu.memory_space<vmem>>, vector<128x128xbf16>
    tpu.vector_store %arg5[%c0_9, %c0_10], %11 {strides = array<i32>} : memref<128x128xbf16, #tpu.memory_space<vmem>>, vector<128x128xbf16>,
    return
  }
  func.func @transform_0(%arg0: i32) -> (i32, i32) {
    %c0_i32 = arith.constant 0 : i32
    %c0_i32_0 = arith.constant 0 : i32
    return %arg0, %c0_i32 : i32, i32
  }
  func.func @transform_1(%arg0: i32) -> (i32, i32) {
    %c0_i32 = arith.constant 0 : i32
    %c0_i32_0 = arith.constant 0 : i32
    %c0_i32_1 = arith.constant 0 : i32
    return %c0_i32, %c0_i32_0 : i32, i32
  }
  func.func @transform_2(%arg0: i32) -> (i32, i32) {
    %c0_i32 = arith.constant 0 : i32
    %c0_i32_0 = arith.constant 0 : i32
    %c0_i32_1 = arith.constant 0 : i32
    return %c0_i32, %c0_i32_0 : i32, i32
  }
  func.func @transform_3(%arg0: i32) -> (i32, i32) {
    %c0_i32 = arith.constant 0 : i32
    %c0_i32_0 = arith.constant 0 : i32
    %c0_i32_1 = arith.constant 0 : i32
    return %c0_i32, %c0_i32_0 : i32, i32
  }
  func.func @transform_4(%arg0: i32) -> (i32, i32) {
    %c0_i32 = arith.constant 0 : i32
    %c0_i32_0 = arith.constant 0 : i32
    return %arg0, %c0_i32 : i32, i32
  }
}

</mosaic_0001>

<llo_original>
// kernel: tpu_custom_call.1
$region0: #{tpu_custom_call.1}
  #allocation0 [shape = 'u32[]', space=smem, size = 0x4, offset = 0x4, fixed_abs, tag = 'smem constant byte address 0x4 - core index']
  #allocation1 [shape = 'u32[72,128]{1,0:T(1,128)}', space=vmem, size = 0x9000, scoped, tag = 'internal scratch']
  %s0 = inlined_call_operand.vmem [shape: bf16[128,128], index: 0, kind: input, shape index: {}]
  %s1 = inlined_call_operand.vmem [shape: bf16[128,32], index: 1, kind: input, shape index: {}]
  %s2 = inlined_call_operand.vmem [shape: f32[1,32], index: 2, kind: input, shape index: {}]
  %s3 = inlined_call_operand.vmem [shape: bf16[32,128], index: 3, kind: input, shape index: {}]
  %s4 = inlined_call_operand.hbm [shape: bf16[128,128], index: 4, kind: output, shape index: {}]
  %s5 = sld [smem:[#allocation0]]
  $region26: #{tpu_custom_call.1} parent=0
    _
  %s7 = ssub.s32 1, %s5
  %s8 = scalar_select 0, %s7, %s5
  $region1: #{tpu_custom_call.1} parent=0
    #allocation2 [shape = 'u8[32768]{0}', space=vmem, size = 0x8000, scoped, tag = 'output window, operand 0, single buffered']
    #allocation3 [shape = 's32[1]{0}', space=sflag, size = 0x4, scoped, tag = 'scoped memory for tpu_custom_call.1']
    %9 = vsyncpa [#allocation3], 0
    // Predicated region
    $region2: #{tpu_custom_call.1} parent=1 // pred_check
      _
    $region3: #{tpu_custom_call.1} parent=1 // pred_check_branch
      %11 = sbr.rel (0) target = $region5
    $region4: #{tpu_custom_call.1} parent=1 // pred_region
      _
    $region5: #{tpu_custom_call.1} parent=1 // pred_fallthru
      _
    // Predicated region
    $region6: #{tpu_custom_call.1} parent=1 // pred_check
      _
    $region7: #{tpu_custom_call.1} parent=1 // pred_check_branch
      %13 = sbr.rel (0) target = $region9
    $region8: #{tpu_custom_call.1} parent=1 // pred_region
      _
    $region9: #{tpu_custom_call.1} parent=1 // pred_fallthru
      _
    // Predicated region
    $region10: #{tpu_custom_call.1} parent=1 // pred_check
      _
    $region11: #{tpu_custom_call.1} parent=1 // pred_check_branch
      %15 = sbr.rel (0) target = $region13
    $region12: #{tpu_custom_call.1} parent=1 // pred_region
      _
    $region13: #{tpu_custom_call.1} parent=1 // pred_fallthru
      _
    // Predicated region
    $region14: #{tpu_custom_call.1} parent=1 // pred_check
      _
    $region15: #{tpu_custom_call.1} parent=1 // pred_check_branch
      %17 = sbr.rel (0) target = $region17
    $region16: #{tpu_custom_call.1} parent=1 // pred_region
      _
    $region17: #{tpu_custom_call.1} parent=1 // pred_fallthru
      _
    %v19 = vld [vmem:[%s0] sm:$0xf]
    %v20 = vld [vmem:[%s0 + $0x4] sm:$0xf]
    %v21 = vld [vmem:[%s0 + $0x8] sm:$0xf]
    %v22 = vld [vmem:[%s0 + $0xc] sm:$0xf]
    %v23 = vld [vmem:[%s0 + $0x10] sm:$0xf]
    %v24 = vld [vmem:[%s0 + $0x14] sm:$0xf]
    %v25 = vld [vmem:[%s0 + $0x18] sm:$0xf]
    %v26 = vld [vmem:[%s0 + $0x1c] sm:$0xf]
    %v27 = vld [vmem:[%s0 + $0x20] sm:$0xf]
    %v28 = vld [vmem:[%s0 + $0x24] sm:$0xf]
    %v29 = vld [vmem:[%s0 + $0x28] sm:$0xf]
    %v30 = vld [vmem:[%s0 + $0x2c] sm:$0xf]
    %v31 = vld [vmem:[%s0 + $0x30] sm:$0xf]
    %v32 = vld [vmem:[%s0 + $0x34] sm:$0xf]
    %v33 = vld [vmem:[%s0 + $0x38] sm:$0xf]
    %v34 = vld [vmem:[%s0 + $0x3c] sm:$0xf]
    %v35 = vld [vmem:[%s1] sm:$0xf]
    %v36 = vld [vmem:[%s1 + $0x4] sm:$0xf]
    %v37 = vld [vmem:[%s1 + $0x8] sm:$0xf]
    %v38 = vld [vmem:[%s1 + $0xc] sm:$0xf]
    %v39 = vld [vmem:[%s1 + $0x10] sm:$0xf]
    %v40 = vld [vmem:[%s1 + $0x14] sm:$0xf]
    %v41 = vld [vmem:[%s1 + $0x18] sm:$0xf]
    %v42 = vld [vmem:[%s1 + $0x1c] sm:$0xf]
    %v43 = vld [vmem:[%s1 + $0x20] sm:$0xf]
    %v44 = vld [vmem:[%s1 + $0x24] sm:$0xf]
    %v45 = vld [vmem:[%s1 + $0x28] sm:$0xf]
    %v46 = vld [vmem:[%s1 + $0x2c] sm:$0xf]
    %v47 = vld [vmem:[%s1 + $0x30] sm:$0xf]
    %v48 = vld [vmem:[%s1 + $0x34] sm:$0xf]
    %v49 = vld [vmem:[%s1 + $0x38] sm:$0xf]
    %v50 = vld [vmem:[%s1 + $0x3c] sm:$0xf]
    %v51 = vld [vmem:[%s2] sm:$0x1]
    %v53 = vperm.slane %v51, 0
    %v71 = vunpack.c.l.b16 %v19
    %v72 = vunpack.c.l.b16 %v20
    %v73 = vunpack.c.l.b16 %v21
    %v74 = vunpack.c.l.b16 %v22
    %v75 = vunpack.c.l.b16 %v23
    %v76 = vunpack.c.l.b16 %v24
    %v77 = vunpack.c.l.b16 %v25
    %v78 = vunpack.c.l.b16 %v26
    %v79 = vunpack.c.l.b16 %v27
    %v80 = vunpack.c.l.b16 %v28
    %v81 = vunpack.c.l.b16 %v29
    %v82 = vunpack.c.l.b16 %v30
    %v83 = vunpack.c.l.b16 %v31
    %v84 = vunpack.c.l.b16 %v32
    %v85 = vunpack.c.l.b16 %v33
    %v86 = vunpack.c.l.b16 %v34
    %v87 = vpack.c.b16 %v72, %v71
    %v88 = vpack.c.b16 %v74, %v73
    %v89 = vpack.c.b16 %v76, %v75
    %v90 = vpack.c.b16 %v78, %v77
    %v91 = vpack.c.b16 %v80, %v79
    %v92 = vpack.c.b16 %v82, %v81
    %v93 = vpack.c.b16 %v84, %v83
    %v94 = vpack.c.b16 %v86, %v85
    %v119 = vunpack.c.l.b16 %v35
    %v120 = vunpack.c.l.b16 %v36
    %v121 = vunpack.c.l.b16 %v37
    %v122 = vunpack.c.l.b16 %v38
    %v123 = vunpack.c.l.b16 %v39
    %v124 = vunpack.c.l.b16 %v40
    %v125 = vunpack.c.l.b16 %v41
    %v126 = vunpack.c.l.b16 %v42
    %v127 = vunpack.c.l.b16 %v43
    %v128 = vunpack.c.l.b16 %v44
    %v129 = vunpack.c.l.b16 %v45
    %v130 = vunpack.c.l.b16 %v46
    %v131 = vunpack.c.l.b16 %v47
    %v132 = vunpack.c.l.b16 %v48
    %v133 = vunpack.c.l.b16 %v49
    %v134 = vunpack.c.l.b16 %v50
    %v135 = vpack.c.b16 %v120, %v119
    %v136 = vpack.c.b16 %v122, %v121
    %v137 = vpack.c.b16 %v124, %v123
    %v138 = vpack.c.b16 %v126, %v125
    %v139 = vpack.c.b16 %v128, %v127
    %v140 = vpack.c.b16 %v130, %v129
    %v141 = vpack.c.b16 %v132, %v131
    %v142 = vpack.c.b16 %v134, %v133
    %151 = vmatpush.bf16.msra.mxu0 %v142
    %152 = vmatpush.bf16.msra.mxu0 %v141
    %153 = vmatpush.bf16.msra.mxu0 %v140
    %154 = vmatpush.bf16.msra.mxu0 %v139
    %155 = vmatpush.bf16.msra.mxu0 %v138
    %156 = vmatpush.bf16.msra.mxu0 %v137
    %157 = vmatpush.bf16.msra.mxu0 %v136
    %158 = vmatpush.bf16.msra.mxu0 %v135
    %159 = vmatmul.bf16.gmra.mxu0 %v87
    %v160 = vpop.f32.mrf.mxu0
    %v161 = vadd.f32 %v53, %v160
    %v162 = vpop.f32.mrf.mxu0
    %v163 = vadd.f32 %v53, %v162
    %164 = vmatmul.bf16.gmra.mxu0 %v88
    %v165 = vpop.f32.mrf.mxu0
    %v166 = vadd.f32 %v53, %v165
    %v167 = vpop.f32.mrf.mxu0
    %v168 = vadd.f32 %v53, %v167
    %169 = vmatmul.bf16.gmra.mxu0 %v89
    %v170 = vpop.f32.mrf.mxu0
    %v171 = vadd.f32 %v53, %v170
    %v172 = vpop.f32.mrf.mxu0
    %v173 = vadd.f32 %v53, %v172
    %174 = vmatmul.bf16.gmra.mxu0 %v90
    %v175 = vpop.f32.mrf.mxu0
    %v176 = vadd.f32 %v53, %v175
    %v177 = vpop.f32.mrf.mxu0
    %v178 = vadd.f32 %v53, %v177
    %179 = vmatmul.bf16.gmra.mxu0 %v91
    %v180 = vpop.f32.mrf.mxu0
    %v181 = vadd.f32 %v53, %v180
    %v182 = vpop.f32.mrf.mxu0
    %v183 = vadd.f32 %v53, %v182
    %184 = vmatmul.bf16.gmra.mxu0 %v92
    %v185 = vpop.f32.mrf.mxu0
    %v186 = vadd.f32 %v53, %v185
    %v187 = vpop.f32.mrf.mxu0
    %v188 = vadd.f32 %v53, %v187
    %189 = vmatmul.bf16.gmra.mxu0 %v93
    %v190 = vpop.f32.mrf.mxu0
    %v191 = vadd.f32 %v53, %v190
    %v192 = vpop.f32.mrf.mxu0
    %v193 = vadd.f32 %v53, %v192
    %194 = vmatmul.bf16.gmra.mxu0 %v94
    %v195 = vpop.f32.mrf.mxu0
    %v196 = vadd.f32 %v53, %v195
    %v197 = vpop.f32.mrf.mxu0
    %v198 = vadd.f32 %v53, %v197
    %199 = vdwg.mxu0
    %v200 = vmax.f32 %v161, 0.0
    %v201 = vmax.f32 %v163, 0.0
    %v202 = vmax.f32 %v166, 0.0
    %v203 = vmax.f32 %v168, 0.0
    %v204 = vmax.f32 %v171, 0.0
    %v205 = vmax.f32 %v173, 0.0
    %v206 = vmax.f32 %v176, 0.0
    %v207 = vmax.f32 %v178, 0.0
    %v208 = vmax.f32 %v181, 0.0
    %v209 = vmax.f32 %v183, 0.0
    %v210 = vmax.f32 %v186, 0.0
    %v211 = vmax.f32 %v188, 0.0
    %v212 = vmax.f32 %v191, 0.0
    %v213 = vmax.f32 %v193, 0.0
    %v214 = vmax.f32 %v196, 0.0
    %v215 = vmax.f32 %v198, 0.0
    %v216 = vpack.c.bf16 %v201, %v200
    %v217 = vpack.c.bf16 %v203, %v202
    %v218 = vpack.c.bf16 %v205, %v204
    %v219 = vpack.c.bf16 %v207, %v206
    %v220 = vpack.c.bf16 %v209, %v208
    %v221 = vpack.c.bf16 %v211, %v210
    %v222 = vpack.c.bf16 %v213, %v212
    %v223 = vpack.c.bf16 %v215, %v214
    %v224 = vld [vmem:[%s3] sm:$0xf]
    %v225 = vld [vmem:[%s3 + $0x4] sm:$0xf]
    %v226 = vld [vmem:[%s3 + $0x8] sm:$0xf]
    %v227 = vld [vmem:[%s3 + $0xc] sm:$0xf]
    %v232 = vunpack.c.l.b16 %v224
    %v233 = vunpack.c.l.b16 %v225
    %v234 = vunpack.c.l.b16 %v226
    %v235 = vunpack.c.l.b16 %v227
    %v236 = vpack.c.b16 %v233, %v232
    %v237 = vpack.c.b16 %v235, %v234
    %vm240 = vcmask 261120
    %v242 = vsel %vm240, %v216, 0
    %v245 = vsel %vm240, %v217, 0
    %v248 = vsel %vm240, %v218, 0
    %v251 = vsel %vm240, %v219, 0
    %v254 = vsel %vm240, %v220, 0
    %v257 = vsel %vm240, %v221, 0
    %v260 = vsel %vm240, %v222, 0
    %v263 = vsel %vm240, %v223, 0
    %265 = vmatpush.bf16.msra.mxu0 0
    %266 = vmatpush.bf16.msra.mxu0 0
    %267 = vmatpush.bf16.msra.mxu0 0
    %268 = vmatpush.bf16.msra.mxu0 0
    %269 = vmatpush.bf16.msra.mxu0 0
    %270 = vmatpush.bf16.msra.mxu0 0
    %271 = vmatpush.bf16.msra.mxu0 %v237
    %272 = vmatpush.bf16.msra.mxu0 %v236
    %273 = vmatmul.bf16.gmra.mxu0 %v242
    %v274 = vpop.f32.mrf.mxu0
    %v275 = vadd.f32 0.0, %v274
    %v276 = vpop.f32.mrf.mxu0
    %v277 = vadd.f32 0.0, %v276
    %278 = vmatmul.bf16.gmra.mxu0 %v245
    %v279 = vpop.f32.mrf.mxu0
    %v280 = vadd.f32 0.0, %v279
    %v281 = vpop.f32.mrf.mxu0
    %v282 = vadd.f32 0.0, %v281
    %283 = vmatmul.bf16.gmra.mxu0 %v248
    %v284 = vpop.f32.mrf.mxu0
    %v285 = vadd.f32 0.0, %v284
    %v286 = vpop.f32.mrf.mxu0
    %v287 = vadd.f32 0.0, %v286
    %288 = vmatmul.bf16.gmra.mxu0 %v251
    %v289 = vpop.f32.mrf.mxu0
    %v290 = vadd.f32 0.0, %v289
    %v291 = vpop.f32.mrf.mxu0
    %v292 = vadd.f32 0.0, %v291
    %293 = vmatmul.bf16.gmra.mxu0 %v254
    %v294 = vpop.f32.mrf.mxu0
    %v295 = vadd.f32 0.0, %v294
    %v296 = vpop.f32.mrf.mxu0
    %v297 = vadd.f32 0.0, %v296
    %298 = vmatmul.bf16.gmra.mxu0 %v257
    %v299 = vpop.f32.mrf.mxu0
    %v300 = vadd.f32 0.0, %v299
    %v301 = vpop.f32.mrf.mxu0
    %v302 = vadd.f32 0.0, %v301
    %303 = vmatmul.bf16.gmra.mxu0 %v260
    %v304 = vpop.f32.mrf.mxu0
    %v305 = vadd.f32 0.0, %v304
    %v306 = vpop.f32.mrf.mxu0
    %v307 = vadd.f32 0.0, %v306
    %308 = vmatmul.bf16.gmra.mxu0 %v263
    %v309 = vpop.f32.mrf.mxu0
    %v310 = vadd.f32 0.0, %v309
    %v311 = vpop.f32.mrf.mxu0
    %v312 = vadd.f32 0.0, %v311
    %313 = vdwg.mxu0
    %v314 = vpack.c.bf16 %v275, %v275
    %v315 = vpack.c.bf16 %v277, %v277
    %v316 = vpack.c.bf16 %v280, %v280
    %v317 = vpack.c.bf16 %v282, %v282
    %v318 = vpack.c.bf16 %v285, %v285
    %v319 = vpack.c.bf16 %v287, %v287
    %v320 = vpack.c.bf16 %v290, %v290
    %v321 = vpack.c.bf16 %v292, %v292
    %v322 = vpack.c.bf16 %v295, %v295
    %v323 = vpack.c.bf16 %v297, %v297
    %v324 = vpack.c.bf16 %v300, %v300
    %v325 = vpack.c.bf16 %v302, %v302
    %v326 = vpack.c.bf16 %v305, %v305
    %v327 = vpack.c.bf16 %v307, %v307
    %v328 = vpack.c.bf16 %v310, %v310
    %v329 = vpack.c.bf16 %v312, %v312
    %330 = vst [vmem:[#allocation2] sm:$0xf] %v314
    %331 = vst [vmem:[#allocation2 + $0x4] sm:$0xf] %v315
    %332 = vst [vmem:[#allocation2 + $0x8] sm:$0xf] %v316
    %333 = vst [vmem:[#allocation2 + $0xc] sm:$0xf] %v317
    %334 = vst [vmem:[#allocation2 + $0x10] sm:$0xf] %v318
    %335 = vst [vmem:[#allocation2 + $0x14] sm:$0xf] %v319
    %336 = vst [vmem:[#allocation2 + $0x18] sm:$0xf] %v320
    %337 = vst [vmem:[#allocation2 + $0x1c] sm:$0xf] %v321
    %338 = vst [vmem:[#allocation2 + $0x20] sm:$0xf] %v322
    %339 = vst [vmem:[#allocation2 + $0x24] sm:$0xf] %v323
    %340 = vst [vmem:[#allocation2 + $0x28] sm:$0xf] %v324
    %341 = vst [vmem:[#allocation2 + $0x2c] sm:$0xf] %v325
    %342 = vst [vmem:[#allocation2 + $0x30] sm:$0xf] %v326
    %343 = vst [vmem:[#allocation2 + $0x34] sm:$0xf] %v327
    %344 = vst [vmem:[#allocation2 + $0x38] sm:$0xf] %v328
    %345 = vst [vmem:[#allocation2 + $0x3c] sm:$0xf] %v329
    // Predicated region
    $region18: #{tpu_custom_call.1} parent=1 // pred_check
      _
    $region19: #{tpu_custom_call.1} parent=1 // pred_check_branch
      %347 = sbr.rel (0) target = $region21
    $region20: #{tpu_custom_call.1} parent=1 // pred_region
      %349 = vsyncadd [#allocation3], 0
      %s350 = sshll.u32 [#allocation2], 4
      %s351 = int_to_ptr.vmem [resolvable:$true] %s350
      %s352 = sshll.u32 %s4, 4
      %s353 = int_to_ptr.hbm [resolvable:$true] %s352
      %358 = dma.vmem_to_hbm [thread:$0]  %s351, 1024, %s353, [#allocation3], 64, 64, 4
    $region21: #{tpu_custom_call.1} parent=1 // pred_fallthru
      _
    // Predicated region
    $region22: #{tpu_custom_call.1} parent=1 // pred_check
      _
    $region23: #{tpu_custom_call.1} parent=1 // pred_check_branch
      %360 = sbr.rel (0) target = $region25
    $region24: #{tpu_custom_call.1} parent=1 // pred_region
      %362 = dma.done [#allocation3], 1024
    $region25: #{tpu_custom_call.1} parent=1 // pred_fallthru
      _
    %363 = vsyncpa [#allocation3], 1

</llo_original>
